<compile_context>
chip_gen: v7x
topology: tpu7x:2x2x1
jax: 0.10.0
libtpu: 0.0.40
codegen_flags: <defaults>
</compile_context>

<pallas_src>
import math

import jax
import jax.numpy as jnp
from jax.experimental import pallas as pl
from jax.experimental.pallas import tpu as pltpu


def _round_up(x, m):
    return (x + m - 1) // m * m


def _fit_tiles(n_rows, d_model, vocab, row_tile, vocab_tile, out_bytes,
               vmem_budget_bytes):
    """Pick (tm, tv) so kernel 1's double-buffered working set fits the VMEM
    budget.  The vocab tile is shrunk first (W is streamed either way; an
    extra grid step costs only ~0.35us), then the row tile."""
    tv = max(128, min(_round_up(vocab_tile, 128), _round_up(vocab, 128)))
    tm = max(8, min(_round_up(row_tile, 8), _round_up(n_rows, 8)))

    def usage(tm_, tv_):
        return (2 * tm_ * d_model * 2          # x tile (bf16), double-buffered
                + 2 * d_model * tv_ * 2        # W tile (bf16)
                + 2 * 8 * tv_ * 4              # bias tile (f32, sublane pad)
                + 2 * tm_ * tv_ * out_bytes    # streamed logits/probs tile
                + 8 * tm_ * 128 * 4)           # per-row stats blocks + scratch

    while usage(tm, tv) > vmem_budget_bytes and (tm > 8 or tv > 128):
        if tv > 512:
            tv -= 128
        elif tm > 128:
            tm = max(128, tm - 128)
        elif tv > 128:
            tv -= 128
        elif tm > 8:
            tm -= 8
        else:
            break
    return tm, tv, usage(tm, tv)


def _logits_stats_kernel(x_ref, w_ref, b_ref, logits_ref, mfin_ref, dinv_ref,
                         m_sc, d_sc):
    """Grid (row_tiles, vocab_tiles); vocab is the inner 'arbitrary' sweep.

    Per step: one MXU matmul produces this vocab tile's logits, streamed
    straight to HBM (per-(i, j) lane-dense block), while the EUP maintains the
    flash-style running (max, denominator) recurrence in VMEM scratch under
    the matmul.  At the last vocab tile the per-row max and 1/denominator are
    emitted (the only resident output blocks, each (tm, 1))."""
    j = pl.program_id(1)

    @pl.when(j == 0)
    def _init():
        m_sc[...] = jnp.full(m_sc.shape, -jnp.inf, m_sc.dtype)
        d_sc[...] = jnp.zeros(d_sc.shape, d_sc.dtype)

    # bf16 x bf16 -> f32 on the MXU; bias add in f32 (padding bias = -1e30).
    logits = jnp.dot(x_ref[...], w_ref[...],
                     preferred_element_type=jnp.float32)
    logits = logits + b_ref[...]                  # (tm, tv) + (1, tv)
    logits_ref[...] = logits.astype(logits_ref.dtype)

    # Online softmax statistics (exp runs on the EUP slot under the MXU).
    m_old = m_sc[...]
    m_new = jnp.maximum(m_old, jnp.max(logits, axis=-1, keepdims=True))
    d_sc[...] = (d_sc[...] * jnp.exp(m_old - m_new)
                 + jnp.sum(jnp.exp(logits - m_new), axis=-1, keepdims=True))
    m_sc[...] = m_new

    @pl.when(j == pl.num_programs(1) - 1)
    def _finalize():
        mfin_ref[...] = m_new
        dinv_ref[...] = 1.0 / d_sc[...]   # exact: tm divides once per row tile


def _normalize_kernel(logits_ref, mfin_ref, dinv_ref, o_ref):
    """Pure elementwise, fully pipelined: probs = exp(logits - m) / denom.
    The exp here is HBM-bandwidth-hidden (EUP >> required rate)."""
    logits = logits_ref[...].astype(jnp.float32)
    p = jnp.exp(logits - mfin_ref[...]) * dinv_ref[...]
    o_ref[...] = p.astype(o_ref.dtype)


def generator_forward(x, w, b, *,
                      row_tile=1024,
                      vocab_tile=1024,
                      matmul_dtype=jnp.bfloat16,
                      out_dtype=None,
                      vmem_budget_bytes=40 * 1024 * 1024):
    """x: (..., d_model); w: (d_model, vocab); b: (vocab,).
    Returns softmax(x @ w + b, axis=-1) with shape (..., vocab).

    matmul_dtype=bf16 / out_dtype=bf16 are explicit accuracy/bandwidth
    trade-offs; pass jnp.float32 for full-precision semantics."""
    lead = x.shape[:-1]
    D = x.shape[-1]
    Dw, V = w.shape
    assert Dw == D, "weight shape must be (d_model, vocab)"
    if out_dtype is None:
        out_dtype = x.dtype
    out_bytes = jnp.dtype(out_dtype).itemsize
    N = math.prod(lead) if lead else 1

    tm, tv, vmem_usage = _fit_tiles(N, D, V, row_tile, vocab_tile, out_bytes,
                                    vmem_budget_bytes)
    Np = _round_up(N, tm)
    Vp = _round_up(V, tv)
    nv = Vp // tv
    nr = Np // tm
    vmem_limit = int(vmem_usage + vmem_usage // 4) + (4 << 20)

    # --- prepare padded / casted operands ------------------------------------
    x2 = x.reshape(N, D)
    if Np != N:
        x2 = jnp.pad(x2, ((0, Np - N), (0, 0)))
    x2 = x2.astype(matmul_dtype)
    wp = (w if Vp == V else jnp.pad(w, ((0, 0), (0, Vp - V)))).astype(matmul_dtype)
    # Padded vocab columns get a hugely negative f32 bias -> ~0 probability.
    bp = b if Vp == V else jnp.pad(b, (0, Vp - V), constant_values=-1e30)
    bp = bp.reshape(1, Vp).astype(jnp.float32)

    # --- pass 1: streamed logits + per-row (max, 1/denominator) --------------
    logits_hbm, m_final, d_inv = pl.pallas_call(
        _logits_stats_kernel,
        out_shape=(
            jax.ShapeDtypeStruct((Np, Vp), out_dtype),   # unnormalized logits
            jax.ShapeDtypeStruct((Np, 1), jnp.float32),  # per-row max
            jax.ShapeDtypeStruct((Np, 1), jnp.float32),  # per-row 1/denom
        ),
        grid_spec=pltpu.PrefetchScalarGridSpec(
            num_scalar_prefetch=0,
            grid=(nr, nv),
            in_specs=[
                pl.BlockSpec((tm, D), lambda i, j: (i, 0)),   # activations
                pl.BlockSpec((D, tv), lambda i, j: (0, j)),   # weight tile
                pl.BlockSpec((1, tv), lambda i, j: (0, j)),   # bias tile
            ],
            out_specs=[
                pl.BlockSpec((tm, tv), lambda i, j: (i, j)),  # logits tile
                pl.BlockSpec((tm, 1), lambda i, j: (i, 0)),   # row max
                pl.BlockSpec((tm, 1), lambda i, j: (i, 0)),   # row 1/denom
            ],
            scratch_shapes=[
                pltpu.VMEM((tm, 1), jnp.float32),  # running max
                pltpu.VMEM((tm, 1), jnp.float32),  # running denominator
            ],
        ),
        compiler_params=pltpu.CompilerParams(
            dimension_semantics=("parallel", "arbitrary"),
            vmem_limit_bytes=vmem_limit,
        ),
    )(x2, wp, bp)

    # --- pass 2: in-place normalize (aliases the logits buffer) --------------
    probs = pl.pallas_call(
        _normalize_kernel,
        out_shape=jax.ShapeDtypeStruct((Np, Vp), out_dtype),
        grid_spec=pltpu.PrefetchScalarGridSpec(
            num_scalar_prefetch=0,
            grid=(nr, nv),
            in_specs=[
                pl.BlockSpec((tm, tv), lambda i, j: (i, j)),
                pl.BlockSpec((tm, 1), lambda i, j: (i, 0)),
                pl.BlockSpec((tm, 1), lambda i, j: (i, 0)),
            ],
            out_specs=pl.BlockSpec((tm, tv), lambda i, j: (i, j)),
        ),
        compiler_params=pltpu.CompilerParams(
            dimension_semantics=("parallel", "parallel"),
            vmem_limit_bytes=vmem_limit,
        ),
        input_output_aliases={0: 0},
    )(logits_hbm, m_final, d_inv)

    return probs[:N, :V].reshape(*lead, V)


if __name__ == "__main__":
    # Small shapes consistent with the module: d_model=32, vocab=64
    batch, seq, d_model, vocab = 2, 8, 32, 64

    key = jax.random.PRNGKey(0)
    kx, kw, kb = jax.random.split(key, 3)

    # Deterministic init (mimics nn.Linear's uniform(-1/sqrt(d), 1/sqrt(d))).
    # PyTorch stores weight as (vocab, d_model); we keep the transposed
    # (d_model, vocab) layout so the kernel does x @ W directly.
    bound = 1.0 / (d_model ** 0.5)
    w = jax.random.uniform(kw, (d_model, vocab), jnp.float32, -bound, bound)
    b = jax.random.uniform(kb, (vocab,), jnp.float32, -bound, bound)
    x = jax.random.normal(kx, (batch, seq, d_model), jnp.float32)

    fwd = jax.jit(generator_forward)
    out = jax.block_until_ready(fwd(x, w, b))
    assert out.shape == (batch, seq, vocab)

    # Sanity: rows of a softmax sum to 1.
    row_sums = jnp.sum(out.astype(jnp.float32), axis=-1)
    assert jnp.allclose(row_sums, jnp.ones_like(row_sums), atol=5e-3)

    # Cross-check against a plain-JAX reference using the same bf16 matmul
    # inputs with f32 accumulation (matches the kernel's compute recipe).
    logits_ref = jnp.dot(x.astype(jnp.bfloat16).reshape(-1, d_model),
                         w.astype(jnp.bfloat16),
                         preferred_element_type=jnp.float32) + b
    ref = jax.nn.softmax(logits_ref, axis=-1).reshape(batch, seq, vocab)
    assert jnp.allclose(out.astype(jnp.float32), ref, atol=5e-3)

    print("KERNEL_OK")
</pallas_src>

<mosaic_0001>
module attributes {stable_mosaic.version = 11 : i64} {
  func.func @_normalize_kernel(%arg0: i32, %arg1: i32, %arg2: memref<16x128xf32, #tpu.memory_space<vmem>>, %arg3: memref<16x1xf32, #tpu.memory_space<vmem>>, %arg4: memref<16x1xf32, #tpu.memory_space<vmem>>, %arg5: memref<16x128xf32, #tpu.memory_space<vmem>>) attributes {dimension_semantics = [#tpu.dimension_semantics<parallel>, #tpu.dimension_semantics<parallel>], iteration_bounds = array<i64: 1, 1>, scalar_prefetch = 0 : i64, scratch_operands = 0 : i64, tpu.core_type = #tpu.core_type<tc>, window_params = [{transform_indices = @transform_0, window_bounds = array<i64: 16, 128>}, {transform_indices = @transform_1, window_bounds = array<i64: 16, 1>}, {transform_indices = @transform_2, window_bounds = array<i64: 16, 1>}, {transform_indices = @transform_3, window_bounds = array<i64: 16, 128>}]} {
    %c0 = arith.constant 0 : index
    %c0_0 = arith.constant 0 : index
    %0 = vector.load %arg2[%c0, %c0_0] : memref<16x128xf32, #tpu.memory_space<vmem>>, vector<16x128xf32>
    %c0_1 = arith.constant 0 : index
    %c0_2 = arith.constant 0 : index
    %1 = vector.load %arg3[%c0_1, %c0_2] : memref<16x1xf32, #tpu.memory_space<vmem>>, vector<16x1xf32>
    %2 = vector.broadcast %1 : vector<16x1xf32> to vector<16x128xf32>
    %3 = arith.subf %0, %2 : vector<16x128xf32>
    %4 = math.exp %3 : vector<16x128xf32>
    %c0_3 = arith.constant 0 : index
    %c0_4 = arith.constant 0 : index
    %5 = vector.load %arg4[%c0_3, %c0_4] : memref<16x1xf32, #tpu.memory_space<vmem>>, vector<16x1xf32>
    %6 = vector.broadcast %5 : vector<16x1xf32> to vector<16x128xf32>
    %7 = arith.mulf %4, %6 : vector<16x128xf32>
    %c0_5 = arith.constant 0 : index
    %c0_6 = arith.constant 0 : index
    %8 = vector.load %arg5[%c0_5, %c0_6] : memref<16x128xf32, #tpu.memory_space<vmem>>, vector<16x128xf32>
    tpu.vector_store %arg5[%c0_5, %c0_6], %7 {strides = array<i32>} : memref<16x128xf32, #tpu.memory_space<vmem>>, vector<16x128xf32>,
    return
  }
  func.func @transform_0(%arg0: i32, %arg1: i32) -> (i32, i32) {
    %c0_i32 = arith.constant 0 : i32
    return %arg0, %arg1 : i32, i32
  }
  func.func @transform_1(%arg0: i32, %arg1: i32) -> (i32, i32) {
    %c0_i32 = arith.constant 0 : i32
    %c0_i32_0 = arith.constant 0 : i32
    return %arg0, %c0_i32 : i32, i32
  }
  func.func @transform_2(%arg0: i32, %arg1: i32) -> (i32, i32) {
    %c0_i32 = arith.constant 0 : i32
    %c0_i32_0 = arith.constant 0 : i32
    return %arg0, %c0_i32 : i32, i32
  }
  func.func @transform_3(%arg0: i32, %arg1: i32) -> (i32, i32) {
    %c0_i32 = arith.constant 0 : i32
    return %arg0, %arg1 : i32, i32
  }
}

module attributes {stable_mosaic.version = 11 : i64} {
  func.func @_logits_stats_kernel(%arg0: i32, %arg1: i32, %arg2: memref<16x32xbf16, #tpu.memory_space<vmem>>, %arg3: memref<32x128xbf16, #tpu.memory_space<vmem>>, %arg4: memref<1x128xf32, #tpu.memory_space<vmem>>, %arg5: memref<16x128xf32, #tpu.memory_space<vmem>>, %arg6: memref<16x1xf32, #tpu.memory_space<vmem>>, %arg7: memref<16x1xf32, #tpu.memory_space<vmem>>, %arg8: memref<16x1xf32, #tpu.memory_space<vmem>>, %arg9: memref<16x1xf32, #tpu.memory_space<vmem>>) attributes {dimension_semantics = [#tpu.dimension_semantics<parallel>, #tpu.dimension_semantics<arbitrary>], iteration_bounds = array<i64: 1, 1>, scalar_prefetch = 0 : i64, scratch_operands = 2 : i64, tpu.core_type = #tpu.core_type<tc>, window_params = [{transform_indices = @transform_0, window_bounds = array<i64: 16, 32>}, {transform_indices = @transform_1, window_bounds = array<i64: 32, 128>}, {transform_indices = @transform_2, window_bounds = array<i64: 1, 128>}, {transform_indices = @transform_3, window_bounds = array<i64: 16, 128>}, {transform_indices = @transform_4, window_bounds = array<i64: 16, 1>}, {transform_indices = @transform_5, window_bounds = array<i64: 16, 1>}]} {
    %c0_i32 = arith.constant 0 : i32
    %0 = arith.cmpi eq, %arg1, %c0_i32 : i32
    %1 = arith.extui %0 : i1 to i32
    %c0_i32_0 = arith.constant 0 : i32
    %2 = arith.cmpi ne, %1, %c0_i32_0 : i32
    scf.if %2 {
      %cst_20 = arith.constant 0xFF800000 : f32
      %29 = vector.broadcast %cst_20 : f32 to vector<16x1xf32>
      %c0_21 = arith.constant 0 : index
      %c0_22 = arith.constant 0 : index
      %30 = vector.load %arg8[%c0_21, %c0_22] : memref<16x1xf32, #tpu.memory_space<vmem>>, vector<16x1xf32>
      tpu.vector_store %arg8[%c0_21, %c0_22], %29 {strides = array<i32>} : memref<16x1xf32, #tpu.memory_space<vmem>>, vector<16x1xf32>,
      %cst_23 = arith.constant 0.000000e+00 : f32
      %31 = vector.broadcast %cst_23 : f32 to vector<16x1xf32>
      %c0_24 = arith.constant 0 : index
      %c0_25 = arith.constant 0 : index
      %32 = vector.load %arg9[%c0_24, %c0_25] : memref<16x1xf32, #tpu.memory_space<vmem>>, vector<16x1xf32>
      tpu.vector_store %arg9[%c0_24, %c0_25], %31 {strides = array<i32>} : memref<16x1xf32, #tpu.memory_space<vmem>>, vector<16x1xf32>,
    } else {
    }
    %c0 = arith.constant 0 : index
    %c0_1 = arith.constant 0 : index
    %3 = vector.load %arg2[%c0, %c0_1] : memref<16x32xbf16, #tpu.memory_space<vmem>>, vector<16x32xbf16>
    %c0_2 = arith.constant 0 : index
    %c0_3 = arith.constant 0 : index
    %4 = vector.load %arg3[%c0_2, %c0_3] : memref<32x128xbf16, #tpu.memory_space<vmem>>, vector<32x128xbf16>
    %cst = arith.constant dense<0.000000e+00> : vector<16x128xf32>
    %5 = tpu.matmul %3, %4, %cst {dimension_numbers = #tpu.dot_dimension_numbers<[1], [0], [0], [1], [0, 0, 1, 1], [], []>} : vector<16x32xbf16>, vector<32x128xbf16>, vector<16x128xf32> -> vector<16x128xf32>
    %c0_4 = arith.constant 0 : index
    %c0_5 = arith.constant 0 : index
    %6 = vector.load %arg4[%c0_4, %c0_5] : memref<1x128xf32, #tpu.memory_space<vmem>>, vector<1x128xf32>
    %7 = vector.broadcast %6 : vector<1x128xf32> to vector<16x128xf32>
    %8 = arith.addf %5, %7 : vector<16x128xf32>
    %c0_6 = arith.constant 0 : index
    %c0_7 = arith.constant 0 : index
    %9 = vector.load %arg5[%c0_6, %c0_7] : memref<16x128xf32, #tpu.memory_space<vmem>>, vector<16x128xf32>
    tpu.vector_store %arg5[%c0_6, %c0_7], %8 {strides = array<i32>} : memref<16x128xf32, #tpu.memory_space<vmem>>, vector<16x128xf32>,
    %c0_8 = arith.constant 0 : index
    %c0_9 = arith.constant 0 : index
    %10 = vector.load %arg8[%c0_8, %c0_9] : memref<16x1xf32, #tpu.memory_space<vmem>>, vector<16x1xf32>
    %cst_10 = arith.constant dense<0xFF800000> : vector<16xf32>
    %11 = vector.multi_reduction <maximumf>, %8, %cst_10 [1] : vector<16x128xf32> to vector<16xf32>
    %12 = vector.shape_cast %11 : vector<16xf32> to vector<16x1xf32>
    %13 = arith.maximumf %10, %12 : vector<16x1xf32>
    %c0_11 = arith.constant 0 : index
    %c0_12 = arith.constant 0 : index
    %14 = vector.load %arg9[%c0_11, %c0_12] : memref<16x1xf32, #tpu.memory_space<vmem>>, vector<16x1xf32>
    %15 = arith.subf %10, %13 : vector<16x1xf32>
    %16 = math.exp %15 : vector<16x1xf32>
    %17 = arith.mulf %14, %16 : vector<16x1xf32>
    %18 = vector.broadcast %13 : vector<16x1xf32> to vector<16x128xf32>
    %19 = arith.subf %8, %18 : vector<16x128xf32>
    %20 = math.exp %19 : vector<16x128xf32>
    %cst_13 = arith.constant dense<0.000000e+00> : vector<16xf32>
    %21 = vector.multi_reduction <add>, %20, %cst_13 [1] : vector<16x128xf32> to vector<16xf32>
    %22 = vector.shape_cast %21 : vector<16xf32> to vector<16x1xf32>
    %23 = arith.addf %17, %22 : vector<16x1xf32>
    %c0_14 = arith.constant 0 : index
    %c0_15 = arith.constant 0 : index
    %24 = vector.load %arg9[%c0_14, %c0_15] : memref<16x1xf32, #tpu.memory_space<vmem>>, vector<16x1xf32>
    tpu.vector_store %arg9[%c0_14, %c0_15], %23 {strides = array<i32>} : memref<16x1xf32, #tpu.memory_space<vmem>>, vector<16x1xf32>,
    %c0_16 = arith.constant 0 : index
    %c0_17 = arith.constant 0 : index
    %25 = vector.load %arg8[%c0_16, %c0_17] : memref<16x1xf32, #tpu.memory_space<vmem>>, vector<16x1xf32>
    tpu.vector_store %arg8[%c0_16, %c0_17], %13 {strides = array<i32>} : memref<16x1xf32, #tpu.memory_space<vmem>>, vector<16x1xf32>,
    %c0_i32_18 = arith.constant 0 : i32
    %26 = arith.cmpi eq, %arg1, %c0_i32_18 : i32
    %27 = arith.extui %26 : i1 to i32
    %c0_i32_19 = arith.constant 0 : i32
    %28 = arith.cmpi ne, %27, %c0_i32_19 : i32
    scf.if %28 {
      %c0_20 = arith.constant 0 : index
      %c0_21 = arith.constant 0 : index
      %29 = vector.load %arg6[%c0_20, %c0_21] : memref<16x1xf32, #tpu.memory_space<vmem>>, vector<16x1xf32>
      tpu.vector_store %arg6[%c0_20, %c0_21], %13 {strides = array<i32>} : memref<16x1xf32, #tpu.memory_space<vmem>>, vector<16x1xf32>,
      %c0_22 = arith.constant 0 : index
      %c0_23 = arith.constant 0 : index
      %30 = vector.load %arg9[%c0_22, %c0_23] : memref<16x1xf32, #tpu.memory_space<vmem>>, vector<16x1xf32>
      %cst_24 = arith.constant 1.000000e+00 : f32
      %31 = vector.broadcast %cst_24 : f32 to vector<16x1xf32>
      %32 = arith.divf %31, %30 : vector<16x1xf32>
      %c0_25 = arith.constant 0 : index
      %c0_26 = arith.constant 0 : index
      %33 = vector.load %arg7[%c0_25, %c0_26] : memref<16x1xf32, #tpu.memory_space<vmem>>, vector<16x1xf32>
      tpu.vector_store %arg7[%c0_25, %c0_26], %32 {strides = array<i32>} : memref<16x1xf32, #tpu.memory_space<vmem>>, vector<16x1xf32>,
    } else {
    }
    return
  }
  func.func @transform_0(%arg0: i32, %arg1: i32) -> (i32, i32) {
    %c0_i32 = arith.constant 0 : i32
    %c0_i32_0 = arith.constant 0 : i32
    return %arg0, %c0_i32 : i32, i32
  }
  func.func @transform_1(%arg0: i32, %arg1: i32) -> (i32, i32) {
    %c0_i32 = arith.constant 0 : i32
    %c0_i32_0 = arith.constant 0 : i32
    return %c0_i32, %arg1 : i32, i32
  }
  func.func @transform_2(%arg0: i32, %arg1: i32) -> (i32, i32) {
    %c0_i32 = arith.constant 0 : i32
    %c0_i32_0 = arith.constant 0 : i32
    return %c0_i32, %arg1 : i32, i32
  }
  func.func @transform_3(%arg0: i32, %arg1: i32) -> (i32, i32) {
    %c0_i32 = arith.constant 0 : i32
    return %arg0, %arg1 : i32, i32
  }
  func.func @transform_4(%arg0: i32, %arg1: i32) -> (i32, i32) {
    %c0_i32 = arith.constant 0 : i32
    %c0_i32_0 = arith.constant 0 : i32
    return %arg0, %c0_i32 : i32, i32
  }
  func.func @transform_5(%arg0: i32, %arg1: i32) -> (i32, i32) {
    %c0_i32 = arith.constant 0 : i32
    %c0_i32_0 = arith.constant 0 : i32
    return %arg0, %c0_i32 : i32, i32
  }
}

</mosaic_0001>

<llo_original>
// kernel: generator_forward.3
$region0: #{generator_forward.3}
  #allocation0 [shape = 'u32[]', space=smem, size = 0x4, offset = 0x4, fixed_abs, tag = 'smem constant byte address 0x4 - core index']
  #allocation1 [shape = 'u32[144,128]{1,0:T(1,128)}', space=vmem, size = 0x12000, scoped, tag = 'internal scratch']
  %s0 = inlined_call_operand.vmem [shape: f32[16,128], index: 0, kind: input, shape index: {}, may-alias: {0,3}]
  %s1 = inlined_call_operand.vmem [shape: f32[16,1], index: 1, kind: input, shape index: {}]
  %s2 = inlined_call_operand.vmem [shape: f32[16,1], index: 2, kind: input, shape index: {}]
  %s3 = inlined_call_operand.vmem [shape: f32[16,128], index: 3, kind: output, shape index: {}, may-alias: {0,3}]
  %s4 = sld [smem:[#allocation0]]
  $region22: #{generator_forward.3} parent=0
    _
  %s6 = ssub.s32 1, %s4
  %s7 = scalar_select 0, %s6, %s4
  // Predicated region
  $region2: #{generator_forward.3} parent=0 // pred_check
    _
  $region3: #{generator_forward.3} parent=0 // pred_check_branch
    %9 = sbr.rel (0) target = $region5
  $region4: #{generator_forward.3} parent=0 // pred_region
    _
  $region5: #{generator_forward.3} parent=0 // pred_fallthru
    _
  // Predicated region
  $region6: #{generator_forward.3} parent=0 // pred_check
    _
  $region7: #{generator_forward.3} parent=0 // pred_check_branch
    %11 = sbr.rel (0) target = $region9
  $region8: #{generator_forward.3} parent=0 // pred_region
    _
  $region9: #{generator_forward.3} parent=0 // pred_fallthru
    _
  // Predicated region
  $region10: #{generator_forward.3} parent=0 // pred_check
    _
  $region11: #{generator_forward.3} parent=0 // pred_check_branch
    %13 = sbr.rel (0) target = $region13
  $region12: #{generator_forward.3} parent=0 // pred_region
    _
  $region13: #{generator_forward.3} parent=0 // pred_fallthru
    _
  %v14 = vld [vmem:[%s0] sm:$0xff]
  %v15 = vld [vmem:[%s0 + $0x8] sm:$0xff]
  %v16 = vld [vmem:[%s1] sm:$0xff]
  %v17 = vld [vmem:[%s1 + $0x8] sm:$0xff]
  %19 = vset.pattern.permute.xlu0 0
  %20 = vperm.xlu0 %19, %v16
  %v21 = vpop.permute.xlu0 %20
  %24 = vset.pattern.permute.xlu0 0
  %25 = vperm.xlu0 %24, %v17
  %v26 = vpop.permute.xlu0 %25
  %v28 = vsub.f32 %v14, %v21
  %v29 = vsub.f32 %v15, %v26
  %v30 = vmul.f32 %v28, 1.442695
  %v31 = vpow.pop %v30
  %v32 = vmul.f32 %v29, 1.442695
  %v33 = vpow.pop %v32
  %v34 = vld [vmem:[%s2] sm:$0xff]
  %v35 = vld [vmem:[%s2 + $0x8] sm:$0xff]
  %37 = vset.pattern.permute.xlu0 0
  %38 = vperm.xlu0 %37, %v34
  %v39 = vpop.permute.xlu0 %38
  %42 = vset.pattern.permute.xlu0 0
  %43 = vperm.xlu0 %42, %v35
  %v44 = vpop.permute.xlu0 %43
  %v46 = vmul.f32 %v31, %v39
  %v47 = vmul.f32 %v33, %v44
  %48 = vst [vmem:[%s3] sm:$0xff] %v46
  %49 = vst [vmem:[%s3 + $0x8] sm:$0xff] %v47
  // Predicated region
  $region14: #{generator_forward.3} parent=0 // pred_check
    _
  $region15: #{generator_forward.3} parent=0 // pred_check_branch
    %51 = sbr.rel (0) target = $region17
  $region16: #{generator_forward.3} parent=0 // pred_region
    _
  $region17: #{generator_forward.3} parent=0 // pred_fallthru
    _
  // Predicated region
  $region18: #{generator_forward.3} parent=0 // pred_check
    _
  $region19: #{generator_forward.3} parent=0 // pred_check_branch
    %53 = sbr.rel (0) target = $region21
  $region20: #{generator_forward.3} parent=0 // pred_region
    _
  $region21: #{generator_forward.3} parent=0 // pred_fallthru
    _

// kernel: generator_forward.2
$region0: #{generator_forward.2}
  #allocation0 [shape = 'u32[]', space=smem, size = 0x4, offset = 0x4, fixed_abs, tag = 'smem constant byte address 0x4 - core index']
  #allocation1 [shape = 'u32[144,128]{1,0:T(1,128)}', space=vmem, size = 0x12000, scoped, tag = 'internal scratch']
  #allocation2 [shape = 'f32[16,1]{1,0:T(8,128)}', space=vmem, size = 0x2000, scoped, tag = 'scratch operand']
  #allocation3 [shape = 'f32[16,1]{1,0:T(8,128)}', space=vmem, size = 0x2000, scoped, tag = 'scratch operand']
  %s0 = inlined_call_operand.vmem [shape: bf16[16,32], index: 0, kind: input, shape index: {}]
  %s1 = inlined_call_operand.vmem [shape: bf16[32,128], index: 1, kind: input, shape index: {}]
  %s2 = inlined_call_operand.vmem [shape: f32[1,128], index: 2, kind: input, shape index: {}]
  %s3 = inlined_call_operand.vmem [shape: f32[16,128], index: 3, kind: output, shape index: {0}]
  %s4 = inlined_call_operand.vmem [shape: f32[16,1], index: 4, kind: output, shape index: {1}]
  %s5 = inlined_call_operand.vmem [shape: f32[16,1], index: 5, kind: output, shape index: {2}]
  %6 = xla_tuple %s3, %s4, %s5
  %s7 = sld [smem:[#allocation0]]
  $region46: #{generator_forward.2} parent=0
    _
  %s9 = ssub.s32 1, %s7
  %s10 = scalar_select 0, %s9, %s7
  // Predicated region
  $region2: #{generator_forward.2} parent=0 // pred_check
    _
  $region3: #{generator_forward.2} parent=0 // pred_check_branch
    %12 = sbr.rel (0) target = $region5
  $region4: #{generator_forward.2} parent=0 // pred_region
    _
  $region5: #{generator_forward.2} parent=0 // pred_fallthru
    _
  // Predicated region
  $region6: #{generator_forward.2} parent=0 // pred_check
    _
  $region7: #{generator_forward.2} parent=0 // pred_check_branch
    %14 = sbr.rel (0) target = $region9
  $region8: #{generator_forward.2} parent=0 // pred_region
    _
  $region9: #{generator_forward.2} parent=0 // pred_fallthru
    _
  // Predicated region
  $region10: #{generator_forward.2} parent=0 // pred_check
    _
  $region11: #{generator_forward.2} parent=0 // pred_check_branch
    %16 = sbr.rel (0) target = $region13
  $region12: #{generator_forward.2} parent=0 // pred_region
    _
  $region13: #{generator_forward.2} parent=0 // pred_fallthru
    _
  %p18 = scmp.eq.s32.totalorder 0, 0
  // Predicated region
  $region14: #{generator_forward.2} parent=0 // pred_check
    %p19 = pneg %p18
  $region15: #{generator_forward.2} parent=0 // pred_check_branch
    %21 = sbr.rel (%p19) target = $region17
  $region16: #{generator_forward.2} parent=0 // pred_region
    %vm22 = vcmask 7168
    %23 = vst.msk [vmem:[#allocation2] sm:$0xff] %vm22, -inf
    %24 = vst.msk [vmem:[#allocation2 + $0x8] sm:$0xff] %vm22, -inf
    %25 = vst.msk [vmem:[#allocation3] sm:$0xff] %vm22, 0.0
    %26 = vst.msk [vmem:[#allocation3 + $0x8] sm:$0xff] %vm22, 0.0
  $region17: #{generator_forward.2} parent=0 // pred_fallthru
    _
  %v27 = vld [vmem:[%s0] sm:$0xf]
  %v28 = vld [vmem:[%s0 + $0x4] sm:$0xf]
  %v29 = vld [vmem:[%s1] sm:$0xf]
  %v30 = vld [vmem:[%s1 + $0x4] sm:$0xf]
  %v31 = vld [vmem:[%s1 + $0x8] sm:$0xf]
  %v32 = vld [vmem:[%s1 + $0xc] sm:$0xf]
  %v33 = vld [vmem:[%s2] sm:$0x1]
  %v35 = vlaneseq
  %v36 = vshrl.u32 %v35, 7
  %v37 = vsub.s32 0, %v36
  %v38 = vrot.slane %v33, %v37
  %v42 = vunpack.c.l.b16 %v27
  %v43 = vunpack.c.l.b16 %v28
  %v44 = vpack.c.b16 %v43, %v42
  %v49 = vunpack.c.l.b16 %v29
  %v50 = vunpack.c.l.b16 %v30
  %v51 = vunpack.c.l.b16 %v31
  %v52 = vunpack.c.l.b16 %v32
  %v53 = vpack.c.b16 %v50, %v49
  %v54 = vpack.c.b16 %v52, %v51
  %vm57 = vcmask 261120
  %v59 = vsel %vm57, %v44, 0
  %61 = vmatprep.subr.bf16.mxu0 0
  %62 = vmatpush1.bf16.msra.mxu0 %v53
  %63 = vmatprep.subr.bf16.mxu0 0
  %64 = vmatpush1.bf16.msra.mxu0 %v54
  %65 = vmatprep.subr.bf16.mxu0 0
  %66 = vmatpush1.bf16.msra.mxu0 0
  %67 = vmatprep.subr.bf16.mxu0 0
  %68 = vmatpush1.bf16.msra.mxu0 0
  %69 = vmatprep.subr.bf16.mxu0 0
  %70 = vmatpush1.bf16.msra.mxu0 0
  %71 = vmatprep.subr.bf16.mxu0 0
  %72 = vmatpush1.bf16.msra.mxu0 0
  %73 = vmatprep.subr.bf16.mxu0 0
  %74 = vmatpush1.bf16.msra.mxu0 0
  %75 = vmatprep.subr.bf16.mxu0 0
  %76 = vmatpush1.bf16.msra.mxu0 0
  %77 = vmatprep.subr.bf16.mxu0 0
  %78 = vmatpush1.bf16.msra.mxu0 0
  %79 = vmatprep.subr.bf16.mxu0 0
  %80 = vmatpush1.bf16.msra.mxu0 0
  %81 = vmatprep.subr.bf16.mxu0 0
  %82 = vmatpush1.bf16.msra.mxu0 0
  %83 = vmatprep.subr.bf16.mxu0 0
  %84 = vmatpush1.bf16.msra.mxu0 0
  %85 = vmatprep.subr.bf16.mxu0 0
  %86 = vmatpush1.bf16.msra.mxu0 0
  %87 = vmatprep.subr.bf16.mxu0 0
  %88 = vmatpush1.bf16.msra.mxu0 0
  %89 = vmatprep.subr.bf16.mxu0 0
  %90 = vmatpush1.bf16.msra.mxu0 0
  %91 = vmatprep.subr.bf16.mxu0 0
  %92 = vmatpush1.bf16.msra.mxu0 0
  %93 = vmatprep.mubr.bf16.mxu0 0
  %94 = vmatmul.mubr.bf16.gmra.mrb[0].mxu0 %v59
  %v95 = vpop.f32.mrb[0].mxu0
  %v96 = vadd.f32 %v38, %v95
  %v97 = vpop.f32.mrb[0].mxu0
  %v98 = vpop.f32.mrb[0].mxu0
  %v99 = vadd.f32 %v38, %v98
  %v100 = vpop.f32.mrb[0].mxu0
  %101 = vdwg.mxu0
  %102 = vst [vmem:[%s3] sm:$0xff] %v96
  %103 = vst [vmem:[%s3 + $0x8] sm:$0xff] %v99
  %v104 = vld [vmem:[#allocation2] sm:$0xff]
  %v105 = vld [vmem:[#allocation2 + $0x8] sm:$0xff]
  %106 = vmax.xlane.f32.xlu0 %v96
  %v107 = vpop.xlane.xlu0 %106
  %108 = vmax.xlane.f32.xlu0 %v99
  %v109 = vpop.xlane.xlu0 %108
  %v110 = vmax.f32 %v104, %v107
  %v111 = vmax.f32 %v105, %v109
  %v112 = vld [vmem:[#allocation3] sm:$0xff]
  %v113 = vld [vmem:[#allocation3 + $0x8] sm:$0xff]
  %v114 = vsub.f32 %v104, %v110
  %v115 = vsub.f32 %v105, %v111
  %v116 = vmul.f32 %v114, 1.442695
  %v117 = vpow.pop %v116
  %v118 = vmul.f32 %v115, 1.442695
  %v119 = vpow.pop %v118
  %v120 = vmul.f32 %v112, %v117
  %v121 = vmul.f32 %v113, %v119
  %123 = vset.pattern.permute.xlu0 0
  %124 = vperm.xlu0 %123, %v110
  %v125 = vpop.permute.xlu0 %124
  %128 = vset.pattern.permute.xlu0 0
  %129 = vperm.xlu0 %128, %v111
  %v130 = vpop.permute.xlu0 %129
  %v132 = vsub.f32 %v96, %v125
  %v133 = vsub.f32 %v99, %v130
  %v134 = vmul.f32 %v132, 1.442695
  %v135 = vpow.pop %v134
  %v136 = vmul.f32 %v133, 1.442695
  %v137 = vpow.pop %v136
  %138 = vadd.xlane.f32.xlu0 %v135
  %v139 = vpop.xlane.xlu0 %138
  %140 = vadd.xlane.f32.xlu0 %v137
  %v141 = vpop.xlane.xlu0 %140
  %v142 = vadd.f32 %v120, %v139
  %v143 = vadd.f32 %v121, %v141
  %vm144 = vcmask 7168
  %145 = vst.msk [vmem:[#allocation3] sm:$0xff] %vm144, %v142
  %146 = vst.msk [vmem:[#allocation3 + $0x8] sm:$0xff] %vm144, %v143
  %147 = vst.msk [vmem:[#allocation2] sm:$0xff] %vm144, %v110
  %148 = vst.msk [vmem:[#allocation2 + $0x8] sm:$0xff] %vm144, %v111
  // Predicated region
  $region18: #{generator_forward.2} parent=0 // pred_check
    %p149 = pneg %p18
  $region19: #{generator_forward.2} parent=0 // pred_check_branch
    %151 = sbr.rel (%p149) target = $region21
  $region20: #{generator_forward.2} parent=0 // pred_region
    %152 = vst.msk [vmem:[%s4] sm:$0xff] %vm144, %v110
    %153 = vst.msk [vmem:[%s4 + $0x8] sm:$0xff] %vm144, %v111
    %v154 = vld [vmem:[#allocation3] sm:$0xff]
    %v155 = vld [vmem:[#allocation3 + $0x8] sm:$0xff]
    %v156 = vrcp.pop %v154
    %v157 = vmul.f32 1.0, %v156
    %v158 = vrcp.pop %v155
    %v159 = vmul.f32 1.0, %v158
    %160 = vst.msk [vmem:[%s5] sm:$0xff] %vm144, %v157
    %161 = vst.msk [vmem:[%s5 + $0x8] sm:$0xff] %vm144, %v159
  $region21: #{generator_forward.2} parent=0 // pred_fallthru
    _
  // Predicated region
  $region22: #{generator_forward.2} parent=0 // pred_check
    _
  $region23: #{generator_forward.2} parent=0 // pred_check_branch
    %163 = sbr.rel (0) target = $region25
  $region24: #{generator_forward.2} parent=0 // pred_region
    _
  $region25: #{generator_forward.2} parent=0 // pred_fallthru
    _
  // Predicated region
  $region26: #{generator_forward.2} parent=0 // pred_check
    _
  $region27: #{generator_forward.2} parent=0 // pred_check_branch
    %165 = sbr.rel (0) target = $region29
  $region28: #{generator_forward.2} parent=0 // pred_region
    _
  $region29: #{generator_forward.2} parent=0 // pred_fallthru
    _
  // Predicated region
  $region30: #{generator_forward.2} parent=0 // pred_check
    _
  $region31: #{generator_forward.2} parent=0 // pred_check_branch
    %167 = sbr.rel (0) target = $region33
  $region32: #{generator_forward.2} parent=0 // pred_region
    _
  $region33: #{generator_forward.2} parent=0 // pred_fallthru
    _
  // Predicated region
  $region34: #{generator_forward.2} parent=0 // pred_check
    _
  $region35: #{generator_forward.2} parent=0 // pred_check_branch
    %169 = sbr.rel (0) target = $region37
  $region36: #{generator_forward.2} parent=0 // pred_region
    _
  $region37: #{generator_forward.2} parent=0 // pred_fallthru
    _
  // Predicated region
  $region38: #{generator_forward.2} parent=0 // pred_check
    _
  $region39: #{generator_forward.2} parent=0 // pred_check_branch
    %171 = sbr.rel (0) target = $region41
  $region40: #{generator_forward.2} parent=0 // pred_region
    _
  $region41: #{generator_forward.2} parent=0 // pred_fallthru
    _
  // Predicated region
  $region42: #{generator_forward.2} parent=0 // pred_check
    _
  $region43: #{generator_forward.2} parent=0 // pred_check_branch
    %173 = sbr.rel (0) target = $region45
  $region44: #{generator_forward.2} parent=0 // pred_region
    _
  $region45: #{generator_forward.2} parent=0 // pred_fallthru
    _

</llo_original>
